<compile_context>
chip_gen: v5e
topology: v5e:2x2
jax: 0.10.0
libtpu: 0.0.40
codegen_flags: <defaults>
</compile_context>

<pallas_src>
import functools

import numpy as np
import jax
import jax.numpy as jnp
from jax.experimental import pallas as pl
from jax.experimental.pallas import tpu as pltpu

_LANES = 128


def _round_up(x, m):
    return ((x + m - 1) // m) * m


@functools.lru_cache(maxsize=1)
def _vmem_cap_bytes():
    """Generation-aware VMEM ceiling: ~48 MiB on v7x (64 MiB physical VMEM),
    ~96 MiB on v5e/v6e (128 MiB physical VMEM)."""
    try:
        phys = int(pltpu.get_tpu_info().vmem_capacity_bytes)
    except Exception:
        phys = 64 << 20  # conservative default (v7x-sized) if query unavailable
    return int(max(32 << 20, (phys * 3) // 4))


# ----------------------------------------------------------------------------
# Kernel 1: fused 2-layer MLP forward (matmul + bias + ELU + matmul + bias)
#   grid = (N // TILE_N,), weights/biases VMEM-resident, bf16 MXU operands,
#   f32 accumulate, lane-dense (128-padded) hidden/output dims.
# ----------------------------------------------------------------------------
def _mlp_kernel(x_ref, w1_ref, b1_ref, w2_ref, b2_ref, out_ref):
    # x / w1 / w2 arrive pre-cast to bf16 (MXU operands); biases are f32.
    h = jnp.dot(x_ref[...], w1_ref[...],
                preferred_element_type=jnp.float32) + b1_ref[...]
    # ELU(alpha=1.0), safe exp (no inf in the untaken branch).
    h = jnp.where(h > 0, h, jnp.exp(jnp.minimum(h, 0.0)) - 1.0)
    o = jnp.dot(h.astype(jnp.bfloat16), w2_ref[...],
                preferred_element_type=jnp.float32) + b2_ref[...]
    out_ref[...] = o.astype(out_ref.dtype)


def prepare_net_params(w1, b1, w2, b2):
    """One-time weight prep (pad lane dims to multiples of 128, cast MXU
    operands to bf16), hoisted out of the per-forward wrapper so repeated
    forward calls are a single pallas_call with no per-call pad/convert traffic.

    NOTE: for real GAT-sized layers on v6e/v7x, prefer 256-lane padding
    (2x256x256 MXU); 128 is kept here since these toy shapes are memory-bound.
    """
    f_in, hid = w1.shape
    f_out = w2.shape[1]
    hid_p = _round_up(hid, _LANES)
    out_p = _round_up(f_out, _LANES)
    return dict(
        w1=jnp.pad(w1, ((0, 0), (0, hid_p - hid))).astype(jnp.bfloat16),
        b1=jnp.pad(b1.reshape(1, -1), ((0, 0), (0, hid_p - hid))).astype(jnp.float32),
        w2=jnp.pad(w2, ((0, hid_p - hid), (0, out_p - f_out))).astype(jnp.bfloat16),
        b2=jnp.pad(b2.reshape(1, -1), ((0, 0), (0, out_p - f_out))).astype(jnp.float32),
        f_out=f_out,
    )


def net_forward(features, params, *, tile_n=1024, out_dtype=jnp.float32,
                keep_lane_padding=False):
    """NET.forward: output = net(features).  features: [N, F_in]."""
    n, f_in = features.shape
    w1p, b1p, w2p, b2p = params["w1"], params["b1"], params["w2"], params["b2"]
    f_out = params["f_out"]
    assert w1p.shape[0] == f_in
    hid_p, out_p = w1p.shape[1], w2p.shape[1]

    # Row tile: multiple of 8 (sublane); collapses to a single grid step when
    # n <= tile_n (each grid step costs ~0.35 us of overhead).
    tile = max(8, min((tile_n // 8) * 8, _round_up(n, 8)))
    n_p = _round_up(n, tile)

    # Feed x as bf16: halves the x-tile DMA bytes / double-buffer footprint and
    # removes the per-tile VPU cast (kernel is HBM/latency bound at these sizes).
    x = features.astype(jnp.bfloat16)
    if n_p != n:
        x = jnp.pad(x, ((0, n_p - n), (0, 0)))

    out_bytes = np.dtype(out_dtype).itemsize
    cost = pl.CostEstimate(
        flops=2 * n_p * (f_in * hid_p + hid_p * out_p),
        transcendentals=n_p * hid_p,
        bytes_accessed=(n_p * f_in * 2 + f_in * hid_p * 2 + hid_p * out_p * 2
                        + (hid_p + out_p) * 4 + n_p * out_p * out_bytes),
    )

    # VMEM: double-buffered x/out tiles + (double-buffered) resident weights +
    # f32 hidden intermediate, with 4x headroom; clamped by generation cap.
    vmem_bytes = (2 * tile * f_in * 2 + 2 * tile * out_p * out_bytes
                  + 2 * (f_in * hid_p + hid_p * out_p) * 2
                  + 2 * (hid_p + out_p) * 4 + tile * hid_p * 4)
    vmem_bytes = int(min(max(4 * vmem_bytes, 16 << 20), _vmem_cap_bytes()))

    # TODO(synk): once real GAT-sized weights are resident, mark the constant-index
    # weight/bias specs with pipeline_mode=pl.Buffered(1); at ~48 KiB of weights
    # the second pipeline buffer is negligible, so it is omitted here.
    out = pl.pallas_call(
        _mlp_kernel,
        out_shape=jax.ShapeDtypeStruct((n_p, out_p), out_dtype),
        grid_spec=pltpu.PrefetchScalarGridSpec(
            num_scalar_prefetch=0,
            grid=(n_p // tile,),
            in_specs=[
                pl.BlockSpec((tile, f_in), lambda i: (i, 0)),    # x: row-tiled
                pl.BlockSpec((f_in, hid_p), lambda i: (0, 0)),   # w1: resident
                pl.BlockSpec((1, hid_p), lambda i: (0, 0)),      # b1: resident
                pl.BlockSpec((hid_p, out_p), lambda i: (0, 0)),  # w2: resident
                pl.BlockSpec((1, out_p), lambda i: (0, 0)),      # b2: resident
            ],
            out_specs=pl.BlockSpec((tile, out_p), lambda i: (i, 0)),
        ),
        compiler_params=pltpu.CompilerParams(
            dimension_semantics=("parallel",),
            vmem_limit_bytes=vmem_bytes,
        ),
        cost_estimate=cost,
    )(x, w1p, b1p, w2p, b2p)

    if keep_lane_padding:
        # Row-slice only; keep the lane-dense 128-multiple output for consumers
        # that can take the padded layout (avoids a masked-store HBM copy).
        return out[:n, :]
    return out[:n, :f_out]


# ----------------------------------------------------------------------------
# Kernel 2: EWC penalty  reg * sum(fisher * (p - optpar)^2)  (from observe())
#   HBM-BW-bound reduction.  Lane-parallel partials accumulate in a resident
#   (1, 8, 128) output block per core; grid = (split, steps) where the leading
#   "parallel" axis splits rows across both v7x TensorCores.
# ----------------------------------------------------------------------------
def _ewc_sum_kernel(p_ref, opt_ref, fish_ref, out_ref):
    i = pl.program_id(1)

    @pl.when(i == 0)
    def _():
        out_ref[...] = jnp.zeros_like(out_ref)

    d = p_ref[...] - opt_ref[...]
    t = fish_ref[...] * d * d                                   # (tile_r, 128) f32
    # Lane-parallel partial accumulation (pure VPU adds, tree-like summation);
    # the single cross-lane reduce happens once in the wrapper.
    out_ref[...] += jnp.sum(t.reshape(-1, 8, _LANES), axis=0, keepdims=True)


def _pick_row_tile(rows, tile_cap):
    """Pick (tile_r, padded_rows): tile_r multiple of 8, <= tile_cap, dividing
    padded_rows.  Prefers a tile that divides `rows` exactly so no padded HBM
    copies of p/optpar/fisher are materialized."""
    hi = min(tile_cap, (rows // 8) * 8)
    for cand in range(hi, 7, -8):
        if rows % cand == 0:
            if cand >= max(8, tile_cap // 8):
                return cand, rows
            break  # divisor exists but is degenerately small -> pad instead
    return tile_cap, _round_up(rows, tile_cap)


def _ewc_sum(p, optpar, fisher, *, tile_rows=1024):
    """sum(fisher * (p - optpar)^2) for one tensor, as a single pallas_call."""
    size = int(p.size)
    rows = -(-size // _LANES)
    tile_cap = max(8, (int(tile_rows) // 8) * 8)

    if rows <= tile_cap:
        tile_r = _round_up(max(rows, 1), 8)
        rows_p = tile_r
    else:
        tile_r, rows_p = _pick_row_tile(rows, tile_cap)
    steps = rows_p // tile_r
    # v7x: split the row range across both TensorCores via a "parallel" axis
    # whenever the step count is even; harmless on single-core v5e/v6e.
    split = 2 if (steps >= 2 and steps % 2 == 0) else 1
    spc = steps // split

    def to2d(a):
        a = a.reshape(-1).astype(jnp.float32)
        pad = rows_p * _LANES - size
        if pad:
            a = jnp.pad(a, (0, pad))       # zeros contribute 0 to the penalty
        return a.reshape(rows_p, _LANES)

    p2, o2, f2 = to2d(p), to2d(optpar), to2d(fisher)

    vmem_bytes = int(min(max(8 * 3 * tile_r * _LANES * 4, 4 << 20),
                         _vmem_cap_bytes()))

    row_map = lambda c, i: (c * spc + i, 0)
    partial = pl.pallas_call(
        _ewc_sum_kernel,
        out_shape=jax.ShapeDtypeStruct((split, 8, _LANES), jnp.float32),
        grid_spec=pltpu.PrefetchScalarGridSpec(
            num_scalar_prefetch=0,
            grid=(split, spc),
            in_specs=[pl.BlockSpec((tile_r, _LANES), row_map) for _ in range(3)],
            out_specs=pl.BlockSpec((1, 8, _LANES), lambda c, i: (c, 0, 0)),
        ),
        compiler_params=pltpu.CompilerParams(
            dimension_semantics=("parallel", "arbitrary"),
            vmem_limit_bytes=vmem_bytes,
        ),
    )(p2, o2, f2)
    return jnp.sum(partial)    # tiny (split*8*128)-element final reduce


def ewc_penalty(p, optpar, fisher, reg, *, tile_rows=1024):
    """EWC term reg * sum(fisher * (p - optpar)^2) for one parameter tensor."""
    return jnp.asarray(reg, jnp.float32) * _ewc_sum(p, optpar, fisher,
                                                    tile_rows=tile_rows)


def ewc_penalty_multi(params, optpars, fishers, reg, *, tile_rows=1024):
    """EWC penalty over all parameter tensors of observe().

    One pallas_call per tensor; no HBM concatenate of params/optpars/fishers
    (the concat roughly doubled total bandwidth of the observe() hot path).
    """
    total = jnp.zeros((), jnp.float32)
    for p, o, f in zip(params, optpars, fishers):
        total = total + _ewc_sum(p, o, f, tile_rows=tile_rows)
    # TODO(synk): for models with many tiny tensors, a single pl.ANY +
    # scalar-prefetched-offset kernel would also amortize per-call overhead.
    return jnp.asarray(reg, jnp.float32) * total


# ----------------------------------------------------------------------------
# Driver
# ----------------------------------------------------------------------------
if __name__ == "__main__":
    key = jax.random.PRNGKey(0)
    (k_x, k_w1, k_b1, k_w2, k_b2,
     k_f1, k_o1, k_f2, k_o2) = jax.random.split(key, 9)

    # Small PPI-like shapes: 512 nodes, 64 input feats, 128 hidden, 121 labels.
    N, F_IN, H, F_OUT = 512, 64, 128, 121

    features = jax.random.normal(k_x, (N, F_IN), dtype=jnp.float32)
    w1 = jax.random.normal(k_w1, (F_IN, H), dtype=jnp.float32) * 0.1
    b1 = jax.random.normal(k_b1, (1, H), dtype=jnp.float32) * 0.1
    w2 = jax.random.normal(k_w2, (H, F_OUT), dtype=jnp.float32) * 0.1
    b2 = jax.random.normal(k_b2, (1, F_OUT), dtype=jnp.float32) * 0.1

    # --- forward pass (NET.forward -> self.net(features)) ---
    params = prepare_net_params(w1, b1, w2, b2)     # one-time weight prep
    out = jax.block_until_ready(net_forward(features, params))
    assert out.shape == (N, F_OUT)

    # Reference (same bf16 MXU operands, f32 accumulate).
    xb = features.astype(jnp.bfloat16)
    h_ref = jnp.dot(xb, w1.astype(jnp.bfloat16),
                    preferred_element_type=jnp.float32) + b1
    h_ref = jnp.where(h_ref > 0, h_ref, jnp.exp(jnp.minimum(h_ref, 0.0)) - 1.0)
    o_ref = jnp.dot(h_ref.astype(jnp.bfloat16), w2.astype(jnp.bfloat16),
                    preferred_element_type=jnp.float32) + b2
    assert jnp.allclose(out, o_ref, atol=2e-2, rtol=2e-2)

    # Lane-padded output variant (row slice only, lane-dense stores kept).
    out_pad = jax.block_until_ready(
        net_forward(features, params, keep_lane_padding=True))
    assert out_pad.shape == (N, _round_up(F_OUT, 128))
    assert jnp.allclose(out_pad[:, :F_OUT], out)

    # --- EWC penalty (hot path of NET.observe) ---
    reg = 0.5  # args.memory_strength
    fisher1 = jax.random.uniform(k_f1, w1.shape, dtype=jnp.float32)
    optpar1 = w1 + 0.01 * jax.random.normal(k_o1, w1.shape, dtype=jnp.float32)
    fisher2 = jax.random.uniform(k_f2, w2.shape, dtype=jnp.float32)
    optpar2 = w2 + 0.01 * jax.random.normal(k_o2, w2.shape, dtype=jnp.float32)

    # Small tile to exercise the gridded (split x steps) accumulation path.
    pen1 = jax.block_until_ready(ewc_penalty(w1, optpar1, fisher1, reg,
                                             tile_rows=16))
    pen1_ref = reg * jnp.sum(fisher1 * (w1 - optpar1) ** 2)
    assert jnp.allclose(pen1, pen1_ref, atol=1e-5, rtol=1e-4)

    # Multi-tensor path (per-tensor pallas_calls, no HBM concat), exercising the
    # divisor tiling on w1 and the pad-fallback tiling on the 128x121 tensor.
    pen_all = jax.block_until_ready(
        ewc_penalty_multi([w1, w2], [optpar1, optpar2], [fisher1, fisher2], reg,
                          tile_rows=64))
    pen_all_ref = (reg * jnp.sum(fisher1 * (w1 - optpar1) ** 2)
                   + reg * jnp.sum(fisher2 * (w2 - optpar2) ** 2))
    assert jnp.allclose(pen_all, pen_all_ref, atol=1e-5, rtol=1e-4)

    print("KERNEL_OK")
</pallas_src>

<mosaic_0001>
module attributes {stable_mosaic.version = 11 : i64} {
  func.func @_mlp_kernel(%arg0: i32, %arg1: memref<512x64xbf16, #tpu.memory_space<vmem>>, %arg2: memref<64x128xbf16, #tpu.memory_space<vmem>>, %arg3: memref<1x128xf32, #tpu.memory_space<vmem>>, %arg4: memref<128x128xbf16, #tpu.memory_space<vmem>>, %arg5: memref<1x128xf32, #tpu.memory_space<vmem>>, %arg6: memref<512x128xf32, #tpu.memory_space<vmem>>) attributes {dimension_semantics = [#tpu.dimension_semantics<parallel>], iteration_bounds = array<i64: 1>, scalar_prefetch = 0 : i64, scratch_operands = 0 : i64, tpu.core_type = #tpu.core_type<tc>, window_params = [{transform_indices = @transform_0, window_bounds = array<i64: 512, 64>}, {pipeline_mode = #tpu.pipeline_mode<synchronous>, transform_indices = @transform_1, window_bounds = array<i64: 64, 128>}, {pipeline_mode = #tpu.pipeline_mode<synchronous>, transform_indices = @transform_2, window_bounds = array<i64: 1, 128>}, {pipeline_mode = #tpu.pipeline_mode<synchronous>, transform_indices = @transform_3, window_bounds = array<i64: 128, 128>}, {pipeline_mode = #tpu.pipeline_mode<synchronous>, transform_indices = @transform_4, window_bounds = array<i64: 1, 128>}, {transform_indices = @transform_5, window_bounds = array<i64: 512, 128>}]} {
    %c0 = arith.constant 0 : index
    %c0_0 = arith.constant 0 : index
    %0 = vector.load %arg1[%c0, %c0_0] : memref<512x64xbf16, #tpu.memory_space<vmem>>, vector<512x64xbf16>
    %c0_1 = arith.constant 0 : index
    %c0_2 = arith.constant 0 : index
    %1 = vector.load %arg2[%c0_1, %c0_2] : memref<64x128xbf16, #tpu.memory_space<vmem>>, vector<64x128xbf16>
    %cst = arith.constant dense<0.000000e+00> : vector<512x128xf32>
    %2 = tpu.matmul %0, %1, %cst {dimension_numbers = #tpu.dot_dimension_numbers<[1], [0], [0], [1], [0, 0, 1, 1], [], []>} : vector<512x64xbf16>, vector<64x128xbf16>, vector<512x128xf32> -> vector<512x128xf32>
    %c0_3 = arith.constant 0 : index
    %c0_4 = arith.constant 0 : index
    %3 = vector.load %arg3[%c0_3, %c0_4] : memref<1x128xf32, #tpu.memory_space<vmem>>, vector<1x128xf32>
    %4 = vector.broadcast %3 : vector<1x128xf32> to vector<512x128xf32>
    %5 = arith.addf %2, %4 : vector<512x128xf32>
    %cst_5 = arith.constant 0.000000e+00 : f32
    %6 = vector.broadcast %cst_5 : f32 to vector<512x128xf32>
    %7 = arith.cmpf ogt, %5, %6 : vector<512x128xf32>
    %cst_6 = arith.constant 0.000000e+00 : f32
    %8 = vector.broadcast %cst_6 : f32 to vector<512x128xf32>
    %9 = arith.minimumf %5, %8 : vector<512x128xf32>
    %10 = math.exp %9 : vector<512x128xf32>
    %cst_7 = arith.constant 1.000000e+00 : f32
    %11 = vector.broadcast %cst_7 : f32 to vector<512x128xf32>
    %12 = arith.subf %10, %11 : vector<512x128xf32>
    %13 = arith.select %7, %5, %12 : vector<512x128xi1>, vector<512x128xf32>
    %14 = arith.truncf %13 : vector<512x128xf32> to vector<512x128xbf16>
    %c0_8 = arith.constant 0 : index
    %c0_9 = arith.constant 0 : index
    %15 = vector.load %arg4[%c0_8, %c0_9] : memref<128x128xbf16, #tpu.memory_space<vmem>>, vector<128x128xbf16>
    %cst_10 = arith.constant dense<0.000000e+00> : vector<512x128xf32>
    %16 = tpu.matmul %14, %15, %cst_10 {dimension_numbers = #tpu.dot_dimension_numbers<[1], [0], [0], [1], [0, 0, 1, 1], [], []>} : vector<512x128xbf16>, vector<128x128xbf16>, vector<512x128xf32> -> vector<512x128xf32>
    %c0_11 = arith.constant 0 : index
    %c0_12 = arith.constant 0 : index
    %17 = vector.load %arg5[%c0_11, %c0_12] : memref<1x128xf32, #tpu.memory_space<vmem>>, vector<1x128xf32>
    %18 = vector.broadcast %17 : vector<1x128xf32> to vector<512x128xf32>
    %19 = arith.addf %16, %18 : vector<512x128xf32>
    %c0_13 = arith.constant 0 : index
    %c0_14 = arith.constant 0 : index
    %20 = vector.load %arg6[%c0_13, %c0_14] : memref<512x128xf32, #tpu.memory_space<vmem>>, vector<512x128xf32>
    tpu.vector_store %arg6[%c0_13, %c0_14], %19 {strides = array<i32>} : memref<512x128xf32, #tpu.memory_space<vmem>>, vector<512x128xf32>,
    return
  }
  func.func @transform_0(%arg0: i32) -> (i32, i32) {
    %c0_i32 = arith.constant 0 : i32
    %c0_i32_0 = arith.constant 0 : i32
    return %arg0, %c0_i32 : i32, i32
  }
  func.func @transform_1(%arg0: i32) -> (i32, i32) {
    %c0_i32 = arith.constant 0 : i32
    %c0_i32_0 = arith.constant 0 : i32
    %c0_i32_1 = arith.constant 0 : i32
    return %c0_i32, %c0_i32_0 : i32, i32
  }
  func.func @transform_2(%arg0: i32) -> (i32, i32) {
    %c0_i32 = arith.constant 0 : i32
    %c0_i32_0 = arith.constant 0 : i32
    %c0_i32_1 = arith.constant 0 : i32
    return %c0_i32, %c0_i32_0 : i32, i32
  }
  func.func @transform_3(%arg0: i32) -> (i32, i32) {
    %c0_i32 = arith.constant 0 : i32
    %c0_i32_0 = arith.constant 0 : i32
    %c0_i32_1 = arith.constant 0 : i32
    return %c0_i32, %c0_i32_0 : i32, i32
  }
  func.func @transform_4(%arg0: i32) -> (i32, i32) {
    %c0_i32 = arith.constant 0 : i32
    %c0_i32_0 = arith.constant 0 : i32
    %c0_i32_1 = arith.constant 0 : i32
    return %c0_i32, %c0_i32_0 : i32, i32
  }
  func.func @transform_5(%arg0: i32) -> (i32, i32) {
    %c0_i32 = arith.constant 0 : i32
    %c0_i32_0 = arith.constant 0 : i32
    return %arg0, %c0_i32 : i32, i32
  }
}

</mosaic_0001>

<llo_original>
// kernel: tpu_custom_call.1
$region0: #{tpu_custom_call.1}
  #allocation0 [shape = 'u32[]', space=smem, size = 0x4, offset = 0x4, fixed_abs, tag = 'smem constant byte address 0x4 - core index']
  #allocation1 [shape = 'u32[72,128]{1,0:T(1,128)}', space=vmem, size = 0x9000, scoped, tag = 'internal scratch']
  %s0 = inlined_call_operand.vmem [shape: bf16[512,64], index: 0, kind: input, shape index: {}]
  %s1 = inlined_call_operand.vmem [shape: bf16[64,128], index: 1, kind: input, shape index: {}]
  %s2 = inlined_call_operand.vmem [shape: f32[1,128], index: 2, kind: input, shape index: {}]
  %s3 = inlined_call_operand.vmem [shape: bf16[128,128], index: 3, kind: input, shape index: {}]
  %s4 = inlined_call_operand.vmem [shape: f32[1,128], index: 4, kind: input, shape index: {}]
  %s5 = inlined_call_operand.hbm [shape: f32[512,128], index: 5, kind: output, shape index: {}]
  %s6 = sld [smem:[#allocation0]]
  $region30: #{tpu_custom_call.1} parent=0
    _
  %s8 = ssub.s32 1, %s6
  %s9 = scalar_select 0, %s8, %s6
  $region1: #{tpu_custom_call.1} parent=0
    #allocation2 [shape = 'u8[262144]{0}', space=vmem, size = 0x40000, scoped, tag = 'output window, operand 0, single buffered']
    #allocation3 [shape = 's32[1]{0}', space=sflag, size = 0x4, scoped, tag = 'scoped memory for tpu_custom_call.1']
    %10 = vsyncpa [#allocation3], 0
    // Predicated region
    $region2: #{tpu_custom_call.1} parent=1 // pred_check
      _
    $region3: #{tpu_custom_call.1} parent=1 // pred_check_branch
      %12 = sbr.rel (0) target = $region5
    $region4: #{tpu_custom_call.1} parent=1 // pred_region
      _
    $region5: #{tpu_custom_call.1} parent=1 // pred_fallthru
      _
    // Predicated region
    $region6: #{tpu_custom_call.1} parent=1 // pred_check
      _
    $region7: #{tpu_custom_call.1} parent=1 // pred_check_branch
      %14 = sbr.rel (0) target = $region9
    $region8: #{tpu_custom_call.1} parent=1 // pred_region
      _
    $region9: #{tpu_custom_call.1} parent=1 // pred_fallthru
      _
    // Predicated region
    $region10: #{tpu_custom_call.1} parent=1 // pred_check
      _
    $region11: #{tpu_custom_call.1} parent=1 // pred_check_branch
      %16 = sbr.rel (0) target = $region13
    $region12: #{tpu_custom_call.1} parent=1 // pred_region
      _
    $region13: #{tpu_custom_call.1} parent=1 // pred_fallthru
      _
    // Predicated region
    $region14: #{tpu_custom_call.1} parent=1 // pred_check
      _
    $region15: #{tpu_custom_call.1} parent=1 // pred_check_branch
      %18 = sbr.rel (0) target = $region17
    $region16: #{tpu_custom_call.1} parent=1 // pred_region
      _
    $region17: #{tpu_custom_call.1} parent=1 // pred_fallthru
      _
    // Predicated region
    $region18: #{tpu_custom_call.1} parent=1 // pred_check
      _
    $region19: #{tpu_custom_call.1} parent=1 // pred_check_branch
      %20 = sbr.rel (0) target = $region21
    $region20: #{tpu_custom_call.1} parent=1 // pred_region
      _
    $region21: #{tpu_custom_call.1} parent=1 // pred_fallthru
      _
    %v22 = vld [vmem:[%s0] sm:$0xf]
    %v23 = vld [vmem:[%s0 + $0x4] sm:$0xf]
    %v24 = vld [vmem:[%s0 + $0x8] sm:$0xf]
    %v25 = vld [vmem:[%s0 + $0xc] sm:$0xf]
    %v26 = vld [vmem:[%s0 + $0x10] sm:$0xf]
    %v27 = vld [vmem:[%s0 + $0x14] sm:$0xf]
    %v28 = vld [vmem:[%s0 + $0x18] sm:$0xf]
    %v29 = vld [vmem:[%s0 + $0x1c] sm:$0xf]
    %v30 = vld [vmem:[%s0 + $0x20] sm:$0xf]
    %v31 = vld [vmem:[%s0 + $0x24] sm:$0xf]
    %v32 = vld [vmem:[%s0 + $0x28] sm:$0xf]
    %v33 = vld [vmem:[%s0 + $0x2c] sm:$0xf]
    %v34 = vld [vmem:[%s0 + $0x30] sm:$0xf]
    %v35 = vld [vmem:[%s0 + $0x34] sm:$0xf]
    %v36 = vld [vmem:[%s0 + $0x38] sm:$0xf]
    %v37 = vld [vmem:[%s0 + $0x3c] sm:$0xf]
    %v38 = vld [vmem:[%s0 + $0x40] sm:$0xf]
    %v39 = vld [vmem:[%s0 + $0x44] sm:$0xf]
    %v40 = vld [vmem:[%s0 + $0x48] sm:$0xf]
    %v41 = vld [vmem:[%s0 + $0x4c] sm:$0xf]
    %v42 = vld [vmem:[%s0 + $0x50] sm:$0xf]
    %v43 = vld [vmem:[%s0 + $0x54] sm:$0xf]
    %v44 = vld [vmem:[%s0 + $0x58] sm:$0xf]
    %v45 = vld [vmem:[%s0 + $0x5c] sm:$0xf]
    %v46 = vld [vmem:[%s0 + $0x60] sm:$0xf]
    %v47 = vld [vmem:[%s0 + $0x64] sm:$0xf]
    %v48 = vld [vmem:[%s0 + $0x68] sm:$0xf]
    %v49 = vld [vmem:[%s0 + $0x6c] sm:$0xf]
    %v50 = vld [vmem:[%s0 + $0x70] sm:$0xf]
    %v51 = vld [vmem:[%s0 + $0x74] sm:$0xf]
    %v52 = vld [vmem:[%s0 + $0x78] sm:$0xf]
    %v53 = vld [vmem:[%s0 + $0x7c] sm:$0xf]
    %v54 = vld [vmem:[%s0 + $0x80] sm:$0xf]
    %v55 = vld [vmem:[%s0 + $0x84] sm:$0xf]
    %v56 = vld [vmem:[%s0 + $0x88] sm:$0xf]
    %v57 = vld [vmem:[%s0 + $0x8c] sm:$0xf]
    %v58 = vld [vmem:[%s0 + $0x90] sm:$0xf]
    %v59 = vld [vmem:[%s0 + $0x94] sm:$0xf]
    %v60 = vld [vmem:[%s0 + $0x98] sm:$0xf]
    %v61 = vld [vmem:[%s0 + $0x9c] sm:$0xf]
    %v62 = vld [vmem:[%s0 + $0xa0] sm:$0xf]
    %v63 = vld [vmem:[%s0 + $0xa4] sm:$0xf]
    %v64 = vld [vmem:[%s0 + $0xa8] sm:$0xf]
    %v65 = vld [vmem:[%s0 + $0xac] sm:$0xf]
    %v66 = vld [vmem:[%s0 + $0xb0] sm:$0xf]
    %v67 = vld [vmem:[%s0 + $0xb4] sm:$0xf]
    %v68 = vld [vmem:[%s0 + $0xb8] sm:$0xf]
    %v69 = vld [vmem:[%s0 + $0xbc] sm:$0xf]
    %v70 = vld [vmem:[%s0 + $0xc0] sm:$0xf]
    %v71 = vld [vmem:[%s0 + $0xc4] sm:$0xf]
    %v72 = vld [vmem:[%s0 + $0xc8] sm:$0xf]
    %v73 = vld [vmem:[%s0 + $0xcc] sm:$0xf]
    %v74 = vld [vmem:[%s0 + $0xd0] sm:$0xf]
    %v75 = vld [vmem:[%s0 + $0xd4] sm:$0xf]
    %v76 = vld [vmem:[%s0 + $0xd8] sm:$0xf]
    %v77 = vld [vmem:[%s0 + $0xdc] sm:$0xf]
    %v78 = vld [vmem:[%s0 + $0xe0] sm:$0xf]
    %v79 = vld [vmem:[%s0 + $0xe4] sm:$0xf]
    %v80 = vld [vmem:[%s0 + $0xe8] sm:$0xf]
    %v81 = vld [vmem:[%s0 + $0xec] sm:$0xf]
    %v82 = vld [vmem:[%s0 + $0xf0] sm:$0xf]
    %v83 = vld [vmem:[%s0 + $0xf4] sm:$0xf]
    %v84 = vld [vmem:[%s0 + $0xf8] sm:$0xf]
    %v85 = vld [vmem:[%s0 + $0xfc] sm:$0xf]
    %v86 = vld [vmem:[%s1] sm:$0xf]
    %v87 = vld [vmem:[%s1 + $0x4] sm:$0xf]
    %v88 = vld [vmem:[%s1 + $0x8] sm:$0xf]
    %v89 = vld [vmem:[%s1 + $0xc] sm:$0xf]
    %v90 = vld [vmem:[%s1 + $0x10] sm:$0xf]
    %v91 = vld [vmem:[%s1 + $0x14] sm:$0xf]
    %v92 = vld [vmem:[%s1 + $0x18] sm:$0xf]
    %v93 = vld [vmem:[%s1 + $0x1c] sm:$0xf]
    %v94 = vld [vmem:[%s2] sm:$0x1]
    %v96 = vperm.slane %v94, 0
    %v162 = vunpack.c.l.b16 %v22
    %v163 = vunpack.c.l.b16 %v23
    %v164 = vunpack.c.l.b16 %v24
    %v165 = vunpack.c.l.b16 %v25
    %v166 = vunpack.c.l.b16 %v26
    %v167 = vunpack.c.l.b16 %v27
    %v168 = vunpack.c.l.b16 %v28
    %v169 = vunpack.c.l.b16 %v29
    %v170 = vunpack.c.l.b16 %v30
    %v171 = vunpack.c.l.b16 %v31
    %v172 = vunpack.c.l.b16 %v32
    %v173 = vunpack.c.l.b16 %v33
    %v174 = vunpack.c.l.b16 %v34
    %v175 = vunpack.c.l.b16 %v35
    %v176 = vunpack.c.l.b16 %v36
    %v177 = vunpack.c.l.b16 %v37
    %v178 = vunpack.c.l.b16 %v38
    %v179 = vunpack.c.l.b16 %v39
    %v180 = vunpack.c.l.b16 %v40
    %v181 = vunpack.c.l.b16 %v41
    %v182 = vunpack.c.l.b16 %v42
    %v183 = vunpack.c.l.b16 %v43
    %v184 = vunpack.c.l.b16 %v44
    %v185 = vunpack.c.l.b16 %v45
    %v186 = vunpack.c.l.b16 %v46
    %v187 = vunpack.c.l.b16 %v47
    %v188 = vunpack.c.l.b16 %v48
    %v189 = vunpack.c.l.b16 %v49
    %v190 = vunpack.c.l.b16 %v50
    %v191 = vunpack.c.l.b16 %v51
    %v192 = vunpack.c.l.b16 %v52
    %v193 = vunpack.c.l.b16 %v53
    %v194 = vunpack.c.l.b16 %v54
    %v195 = vunpack.c.l.b16 %v55
    %v196 = vunpack.c.l.b16 %v56
    %v197 = vunpack.c.l.b16 %v57
    %v198 = vunpack.c.l.b16 %v58
    %v199 = vunpack.c.l.b16 %v59
    %v200 = vunpack.c.l.b16 %v60
    %v201 = vunpack.c.l.b16 %v61
    %v202 = vunpack.c.l.b16 %v62
    %v203 = vunpack.c.l.b16 %v63
    %v204 = vunpack.c.l.b16 %v64
    %v205 = vunpack.c.l.b16 %v65
    %v206 = vunpack.c.l.b16 %v66
    %v207 = vunpack.c.l.b16 %v67
    %v208 = vunpack.c.l.b16 %v68
    %v209 = vunpack.c.l.b16 %v69
    %v210 = vunpack.c.l.b16 %v70
    %v211 = vunpack.c.l.b16 %v71
    %v212 = vunpack.c.l.b16 %v72
    %v213 = vunpack.c.l.b16 %v73
    %v214 = vunpack.c.l.b16 %v74
    %v215 = vunpack.c.l.b16 %v75
    %v216 = vunpack.c.l.b16 %v76
    %v217 = vunpack.c.l.b16 %v77
    %v218 = vunpack.c.l.b16 %v78
    %v219 = vunpack.c.l.b16 %v79
    %v220 = vunpack.c.l.b16 %v80
    %v221 = vunpack.c.l.b16 %v81
    %v222 = vunpack.c.l.b16 %v82
    %v223 = vunpack.c.l.b16 %v83
    %v224 = vunpack.c.l.b16 %v84
    %v225 = vunpack.c.l.b16 %v85
    %v226 = vpack.c.b16 %v163, %v162
    %v227 = vpack.c.b16 %v165, %v164
    %v228 = vpack.c.b16 %v167, %v166
    %v229 = vpack.c.b16 %v169, %v168
    %v230 = vpack.c.b16 %v171, %v170
    %v231 = vpack.c.b16 %v173, %v172
    %v232 = vpack.c.b16 %v175, %v174
    %v233 = vpack.c.b16 %v177, %v176
    %v234 = vpack.c.b16 %v179, %v178
    %v235 = vpack.c.b16 %v181, %v180
    %v236 = vpack.c.b16 %v183, %v182
    %v237 = vpack.c.b16 %v185, %v184
    %v238 = vpack.c.b16 %v187, %v186
    %v239 = vpack.c.b16 %v189, %v188
    %v240 = vpack.c.b16 %v191, %v190
    %v241 = vpack.c.b16 %v193, %v192
    %v242 = vpack.c.b16 %v195, %v194
    %v243 = vpack.c.b16 %v197, %v196
    %v244 = vpack.c.b16 %v199, %v198
    %v245 = vpack.c.b16 %v201, %v200
    %v246 = vpack.c.b16 %v203, %v202
    %v247 = vpack.c.b16 %v205, %v204
    %v248 = vpack.c.b16 %v207, %v206
    %v249 = vpack.c.b16 %v209, %v208
    %v250 = vpack.c.b16 %v211, %v210
    %v251 = vpack.c.b16 %v213, %v212
    %v252 = vpack.c.b16 %v215, %v214
    %v253 = vpack.c.b16 %v217, %v216
    %v254 = vpack.c.b16 %v219, %v218
    %v255 = vpack.c.b16 %v221, %v220
    %v256 = vpack.c.b16 %v223, %v222
    %v257 = vpack.c.b16 %v225, %v224
    %v266 = vunpack.c.l.b16 %v86
    %v267 = vunpack.c.l.b16 %v87
    %v268 = vunpack.c.l.b16 %v88
    %v269 = vunpack.c.l.b16 %v89
    %v270 = vunpack.c.l.b16 %v90
    %v271 = vunpack.c.l.b16 %v91
    %v272 = vunpack.c.l.b16 %v92
    %v273 = vunpack.c.l.b16 %v93
    %v274 = vpack.c.b16 %v267, %v266
    %v275 = vpack.c.b16 %v269, %v268
    %v276 = vpack.c.b16 %v271, %v270
    %v277 = vpack.c.b16 %v273, %v272
    %vm282 = vcmask 523264
    %v284 = vsel %vm282, %v226, 0
    %v287 = vsel %vm282, %v227, 0
    %v290 = vsel %vm282, %v228, 0
    %v293 = vsel %vm282, %v229, 0
    %v296 = vsel %vm282, %v230, 0
    %v299 = vsel %vm282, %v231, 0
    %v302 = vsel %vm282, %v232, 0
    %v305 = vsel %vm282, %v233, 0
    %v308 = vsel %vm282, %v234, 0
    %v311 = vsel %vm282, %v235, 0
    %v314 = vsel %vm282, %v236, 0
    %v317 = vsel %vm282, %v237, 0
    %v320 = vsel %vm282, %v238, 0
    %v323 = vsel %vm282, %v239, 0
    %v326 = vsel %vm282, %v240, 0
    %v329 = vsel %vm282, %v241, 0
    %v332 = vsel %vm282, %v242, 0
    %v335 = vsel %vm282, %v243, 0
    %v338 = vsel %vm282, %v244, 0
    %v341 = vsel %vm282, %v245, 0
    %v344 = vsel %vm282, %v246, 0
    %v347 = vsel %vm282, %v247, 0
    %v350 = vsel %vm282, %v248, 0
    %v353 = vsel %vm282, %v249, 0
    %v356 = vsel %vm282, %v250, 0
    %v359 = vsel %vm282, %v251, 0
    %v362 = vsel %vm282, %v252, 0
    %v365 = vsel %vm282, %v253, 0
    %v368 = vsel %vm282, %v254, 0
    %v371 = vsel %vm282, %v255, 0
    %v374 = vsel %vm282, %v256, 0
    %v377 = vsel %vm282, %v257, 0
    %379 = vmatpush.bf16.msra.mxu0 0
    %380 = vmatpush.bf16.msra.mxu0 0
    %381 = vmatpush.bf16.msra.mxu0 0
    %382 = vmatpush.bf16.msra.mxu0 0
    %383 = vmatpush.bf16.msra.mxu0 %v277
    %384 = vmatpush.bf16.msra.mxu0 %v276
    %385 = vmatpush.bf16.msra.mxu0 %v275
    %386 = vmatpush.bf16.msra.mxu0 %v274
    %387 = vmatmul.bf16.gmra.mxu0 %v284
    %v388 = vpop.f32.mrf.mxu0
    %v389 = vadd.f32 %v96, %v388
    %v390 = vpop.f32.mrf.mxu0
    %v391 = vadd.f32 %v96, %v390
    %392 = vmatmul.bf16.gmra.mxu0 %v287
    %v393 = vpop.f32.mrf.mxu0
    %v394 = vadd.f32 %v96, %v393
    %v395 = vpop.f32.mrf.mxu0
    %v396 = vadd.f32 %v96, %v395
    %397 = vmatmul.bf16.gmra.mxu0 %v290
    %v398 = vpop.f32.mrf.mxu0
    %v399 = vadd.f32 %v96, %v398
    %v400 = vpop.f32.mrf.mxu0
    %v401 = vadd.f32 %v96, %v400
    %402 = vmatmul.bf16.gmra.mxu0 %v293
    %v403 = vpop.f32.mrf.mxu0
    %v404 = vadd.f32 %v96, %v403
    %v405 = vpop.f32.mrf.mxu0
    %v406 = vadd.f32 %v96, %v405
    %407 = vmatmul.bf16.gmra.mxu0 %v296
    %v408 = vpop.f32.mrf.mxu0
    %v409 = vadd.f32 %v96, %v408
    %v410 = vpop.f32.mrf.mxu0
    %v411 = vadd.f32 %v96, %v410
    %412 = vmatmul.bf16.gmra.mxu0 %v299
    %v413 = vpop.f32.mrf.mxu0
    %v414 = vadd.f32 %v96, %v413
    %v415 = vpop.f32.mrf.mxu0
    %v416 = vadd.f32 %v96, %v415
    %417 = vmatmul.bf16.gmra.mxu0 %v302
    %v418 = vpop.f32.mrf.mxu0
    %v419 = vadd.f32 %v96, %v418
    %v420 = vpop.f32.mrf.mxu0
    %v421 = vadd.f32 %v96, %v420
    %422 = vmatmul.bf16.gmra.mxu0 %v305
    %v423 = vpop.f32.mrf.mxu0
    %v424 = vadd.f32 %v96, %v423
    %v425 = vpop.f32.mrf.mxu0
    %v426 = vadd.f32 %v96, %v425
    %427 = vmatmul.bf16.gmra.mxu0 %v308
    %v428 = vpop.f32.mrf.mxu0
    %v429 = vadd.f32 %v96, %v428
    %v430 = vpop.f32.mrf.mxu0
    %v431 = vadd.f32 %v96, %v430
    %432 = vmatmul.bf16.gmra.mxu0 %v311
    %v433 = vpop.f32.mrf.mxu0
    %v434 = vadd.f32 %v96, %v433
    %v435 = vpop.f32.mrf.mxu0
    %v436 = vadd.f32 %v96, %v435
    %437 = vmatmul.bf16.gmra.mxu0 %v314
    %v438 = vpop.f32.mrf.mxu0
    %v439 = vadd.f32 %v96, %v438
    %v440 = vpop.f32.mrf.mxu0
    %v441 = vadd.f32 %v96, %v440
    %442 = vmatmul.bf16.gmra.mxu0 %v317
    %v443 = vpop.f32.mrf.mxu0
    %v444 = vadd.f32 %v96, %v443
    %v445 = vpop.f32.mrf.mxu0
    %v446 = vadd.f32 %v96, %v445
    %447 = vmatmul.bf16.gmra.mxu0 %v320
    %v448 = vpop.f32.mrf.mxu0
    %v449 = vadd.f32 %v96, %v448
    %v450 = vpop.f32.mrf.mxu0
    %v451 = vadd.f32 %v96, %v450
    %452 = vmatmul.bf16.gmra.mxu0 %v323
    %v453 = vpop.f32.mrf.mxu0
    %v454 = vadd.f32 %v96, %v453
    %v455 = vpop.f32.mrf.mxu0
    %v456 = vadd.f32 %v96, %v455
    %457 = vmatmul.bf16.gmra.mxu0 %v326
    %v458 = vpop.f32.mrf.mxu0
    %v459 = vadd.f32 %v96, %v458
    %v460 = vpop.f32.mrf.mxu0
    %v461 = vadd.f32 %v96, %v460
    %462 = vmatmul.bf16.gmra.mxu0 %v329
    %v463 = vpop.f32.mrf.mxu0
    %v464 = vadd.f32 %v96, %v463
    %v465 = vpop.f32.mrf.mxu0
    %v466 = vadd.f32 %v96, %v465
    %467 = vmatmul.bf16.gmra.mxu0 %v332
    %v468 = vpop.f32.mrf.mxu0
    %v469 = vadd.f32 %v96, %v468
    %v470 = vpop.f32.mrf.mxu0
    %v471 = vadd.f32 %v96, %v470
    %472 = vmatmul.bf16.gmra.mxu0 %v335
    %v473 = vpop.f32.mrf.mxu0
    %v474 = vadd.f32 %v96, %v473
    %v475 = vpop.f32.mrf.mxu0
    %v476 = vadd.f32 %v96, %v475
    %477 = vmatmul.bf16.gmra.mxu0 %v338
    %v478 = vpop.f32.mrf.mxu0
    %v479 = vadd.f32 %v96, %v478
    %v480 = vpop.f32.mrf.mxu0
    %v481 = vadd.f32 %v96, %v480
    %482 = vmatmul.bf16.gmra.mxu0 %v341
    %v483 = vpop.f32.mrf.mxu0
    %v484 = vadd.f32 %v96, %v483
    %v485 = vpop.f32.mrf.mxu0
    %v486 = vadd.f32 %v96, %v485
    %487 = vmatmul.bf16.gmra.mxu0 %v344
    %v488 = vpop.f32.mrf.mxu0
    %v489 = vadd.f32 %v96, %v488
    %v490 = vpop.f32.mrf.mxu0
    %v491 = vadd.f32 %v96, %v490
    %492 = vmatmul.bf16.gmra.mxu0 %v347
    %v493 = vpop.f32.mrf.mxu0
    %v494 = vadd.f32 %v96, %v493
    %v495 = vpop.f32.mrf.mxu0
    %v496 = vadd.f32 %v96, %v495
    %497 = vmatmul.bf16.gmra.mxu0 %v350
    %v498 = vpop.f32.mrf.mxu0
    %v499 = vadd.f32 %v96, %v498
    %v500 = vpop.f32.mrf.mxu0
    %v501 = vadd.f32 %v96, %v500
    %502 = vmatmul.bf16.gmra.mxu0 %v353
    %v503 = vpop.f32.mrf.mxu0
    %v504 = vadd.f32 %v96, %v503
    %v505 = vpop.f32.mrf.mxu0
    %v506 = vadd.f32 %v96, %v505
    %507 = vmatmul.bf16.gmra.mxu0 %v356
    %v508 = vpop.f32.mrf.mxu0
    %v509 = vadd.f32 %v96, %v508
    %v510 = vpop.f32.mrf.mxu0
    %v511 = vadd.f32 %v96, %v510
    %512 = vmatmul.bf16.gmra.mxu0 %v359
    %v513 = vpop.f32.mrf.mxu0
    %v514 = vadd.f32 %v96, %v513
    %v515 = vpop.f32.mrf.mxu0
    %v516 = vadd.f32 %v96, %v515
    %517 = vmatmul.bf16.gmra.mxu0 %v362
    %v518 = vpop.f32.mrf.mxu0
    %v519 = vadd.f32 %v96, %v518
    %v520 = vpop.f32.mrf.mxu0
    %v521 = vadd.f32 %v96, %v520
    %522 = vmatmul.bf16.gmra.mxu0 %v365
    %v523 = vpop.f32.mrf.mxu0
    %v524 = vadd.f32 %v96, %v523
    %v525 = vpop.f32.mrf.mxu0
    %v526 = vadd.f32 %v96, %v525
    %527 = vmatmul.bf16.gmra.mxu0 %v368
    %v528 = vpop.f32.mrf.mxu0
    %v529 = vadd.f32 %v96, %v528
    %v530 = vpop.f32.mrf.mxu0
    %v531 = vadd.f32 %v96, %v530
    %532 = vmatmul.bf16.gmra.mxu0 %v371
    %v533 = vpop.f32.mrf.mxu0
    %v534 = vadd.f32 %v96, %v533
    %v535 = vpop.f32.mrf.mxu0
    %v536 = vadd.f32 %v96, %v535
    %537 = vmatmul.bf16.gmra.mxu0 %v374
    %v538 = vpop.f32.mrf.mxu0
    %v539 = vadd.f32 %v96, %v538
    %v540 = vpop.f32.mrf.mxu0
    %v541 = vadd.f32 %v96, %v540
    %542 = vmatmul.bf16.gmra.mxu0 %v377
    %v543 = vpop.f32.mrf.mxu0
    %v544 = vadd.f32 %v96, %v543
    %v545 = vpop.f32.mrf.mxu0
    %v546 = vadd.f32 %v96, %v545
    %547 = vdwg.mxu0
    %vm548 = vcmp.gt.f32.partialorder %v389, 0.0
    %vm549 = vcmp.gt.f32.partialorder %v391, 0.0
    %vm550 = vcmp.gt.f32.partialorder %v394, 0.0
    %vm551 = vcmp.gt.f32.partialorder %v396, 0.0
    %vm552 = vcmp.gt.f32.partialorder %v399, 0.0
    %vm553 = vcmp.gt.f32.partialorder %v401, 0.0
    %vm554 = vcmp.gt.f32.partialorder %v404, 0.0
    %vm555 = vcmp.gt.f32.partialorder %v406, 0.0
    %vm556 = vcmp.gt.f32.partialorder %v409, 0.0
    %vm557 = vcmp.gt.f32.partialorder %v411, 0.0
    %vm558 = vcmp.gt.f32.partialorder %v414, 0.0
    %vm559 = vcmp.gt.f32.partialorder %v416, 0.0
    %vm560 = vcmp.gt.f32.partialorder %v419, 0.0
    %vm561 = vcmp.gt.f32.partialorder %v421, 0.0
    %vm562 = vcmp.gt.f32.partialorder %v424, 0.0
    %vm563 = vcmp.gt.f32.partialorder %v426, 0.0
    %vm564 = vcmp.gt.f32.partialorder %v429, 0.0
    %vm565 = vcmp.gt.f32.partialorder %v431, 0.0
    %vm566 = vcmp.gt.f32.partialorder %v434, 0.0
    %vm567 = vcmp.gt.f32.partialorder %v436, 0.0
    %vm568 = vcmp.gt.f32.partialorder %v439, 0.0
    %vm569 = vcmp.gt.f32.partialorder %v441, 0.0
    %vm570 = vcmp.gt.f32.partialorder %v444, 0.0
    %vm571 = vcmp.gt.f32.partialorder %v446, 0.0
    %vm572 = vcmp.gt.f32.partialorder %v449, 0.0
    %vm573 = vcmp.gt.f32.partialorder %v451, 0.0
    %vm574 = vcmp.gt.f32.partialorder %v454, 0.0
    %vm575 = vcmp.gt.f32.partialorder %v456, 0.0
    %vm576 = vcmp.gt.f32.partialorder %v459, 0.0
    %vm577 = vcmp.gt.f32.partialorder %v461, 0.0
    %vm578 = vcmp.gt.f32.partialorder %v464, 0.0
    %vm579 = vcmp.gt.f32.partialorder %v466, 0.0
    %vm580 = vcmp.gt.f32.partialorder %v469, 0.0
    %vm581 = vcmp.gt.f32.partialorder %v471, 0.0
    %vm582 = vcmp.gt.f32.partialorder %v474, 0.0
    %vm583 = vcmp.gt.f32.partialorder %v476, 0.0
    %vm584 = vcmp.gt.f32.partialorder %v479, 0.0
    %vm585 = vcmp.gt.f32.partialorder %v481, 0.0
    %vm586 = vcmp.gt.f32.partialorder %v484, 0.0
    %vm587 = vcmp.gt.f32.partialorder %v486, 0.0
    %vm588 = vcmp.gt.f32.partialorder %v489, 0.0
    %vm589 = vcmp.gt.f32.partialorder %v491, 0.0
    %vm590 = vcmp.gt.f32.partialorder %v494, 0.0
    %vm591 = vcmp.gt.f32.partialorder %v496, 0.0
    %vm592 = vcmp.gt.f32.partialorder %v499, 0.0
    %vm593 = vcmp.gt.f32.partialorder %v501, 0.0
    %vm594 = vcmp.gt.f32.partialorder %v504, 0.0
    %vm595 = vcmp.gt.f32.partialorder %v506, 0.0
    %vm596 = vcmp.gt.f32.partialorder %v509, 0.0
    %vm597 = vcmp.gt.f32.partialorder %v511, 0.0
    %vm598 = vcmp.gt.f32.partialorder %v514, 0.0
    %vm599 = vcmp.gt.f32.partialorder %v516, 0.0
    %vm600 = vcmp.gt.f32.partialorder %v519, 0.0
    %vm601 = vcmp.gt.f32.partialorder %v521, 0.0
    %vm602 = vcmp.gt.f32.partialorder %v524, 0.0
    %vm603 = vcmp.gt.f32.partialorder %v526, 0.0
    %vm604 = vcmp.gt.f32.partialorder %v529, 0.0
    %vm605 = vcmp.gt.f32.partialorder %v531, 0.0
    %vm606 = vcmp.gt.f32.partialorder %v534, 0.0
    %vm607 = vcmp.gt.f32.partialorder %v536, 0.0
    %vm608 = vcmp.gt.f32.partialorder %v539, 0.0
    %vm609 = vcmp.gt.f32.partialorder %v541, 0.0
    %vm610 = vcmp.gt.f32.partialorder %v544, 0.0
    %vm611 = vcmp.gt.f32.partialorder %v546, 0.0
    %v612 = vmin.f32 %v389, 0.0
    %v613 = vmin.f32 %v391, 0.0
    %v614 = vmin.f32 %v394, 0.0
    %v615 = vmin.f32 %v396, 0.0
    %v616 = vmin.f32 %v399, 0.0
    %v617 = vmin.f32 %v401, 0.0
    %v618 = vmin.f32 %v404, 0.0
    %v619 = vmin.f32 %v406, 0.0
    %v620 = vmin.f32 %v409, 0.0
    %v621 = vmin.f32 %v411, 0.0
    %v622 = vmin.f32 %v414, 0.0
    %v623 = vmin.f32 %v416, 0.0
    %v624 = vmin.f32 %v419, 0.0
    %v625 = vmin.f32 %v421, 0.0
    %v626 = vmin.f32 %v424, 0.0
    %v627 = vmin.f32 %v426, 0.0
    %v628 = vmin.f32 %v429, 0.0
    %v629 = vmin.f32 %v431, 0.0
    %v630 = vmin.f32 %v434, 0.0
    %v631 = vmin.f32 %v436, 0.0
    %v632 = vmin.f32 %v439, 0.0
    %v633 = vmin.f32 %v441, 0.0
    %v634 = vmin.f32 %v444, 0.0
    %v635 = vmin.f32 %v446, 0.0
    %v636 = vmin.f32 %v449, 0.0
    %v637 = vmin.f32 %v451, 0.0
    %v638 = vmin.f32 %v454, 0.0
    %v639 = vmin.f32 %v456, 0.0
    %v640 = vmin.f32 %v459, 0.0
    %v641 = vmin.f32 %v461, 0.0
    %v642 = vmin.f32 %v464, 0.0
    %v643 = vmin.f32 %v466, 0.0
    %v644 = vmin.f32 %v469, 0.0
    %v645 = vmin.f32 %v471, 0.0
    %v646 = vmin.f32 %v474, 0.0
    %v647 = vmin.f32 %v476, 0.0
    %v648 = vmin.f32 %v479, 0.0
    %v649 = vmin.f32 %v481, 0.0
    %v650 = vmin.f32 %v484, 0.0
    %v651 = vmin.f32 %v486, 0.0
    %v652 = vmin.f32 %v489, 0.0
    %v653 = vmin.f32 %v491, 0.0
    %v654 = vmin.f32 %v494, 0.0
    %v655 = vmin.f32 %v496, 0.0
    %v656 = vmin.f32 %v499, 0.0
    %v657 = vmin.f32 %v501, 0.0
    %v658 = vmin.f32 %v504, 0.0
    %v659 = vmin.f32 %v506, 0.0
    %v660 = vmin.f32 %v509, 0.0
    %v661 = vmin.f32 %v511, 0.0
    %v662 = vmin.f32 %v514, 0.0
    %v663 = vmin.f32 %v516, 0.0
    %v664 = vmin.f32 %v519, 0.0
    %v665 = vmin.f32 %v521, 0.0
    %v666 = vmin.f32 %v524, 0.0
    %v667 = vmin.f32 %v526, 0.0
    %v668 = vmin.f32 %v529, 0.0
    %v669 = vmin.f32 %v531, 0.0
    %v670 = vmin.f32 %v534, 0.0
    %v671 = vmin.f32 %v536, 0.0
    %v672 = vmin.f32 %v539, 0.0
    %v673 = vmin.f32 %v541, 0.0
    %v674 = vmin.f32 %v544, 0.0
    %v675 = vmin.f32 %v546, 0.0
    %v676 = vmul.f32 %v612, 1.442695
    %v677 = vpow.pop %v676
    %v678 = vmul.f32 %v613, 1.442695
    %v679 = vpow.pop %v678
    %v680 = vmul.f32 %v614, 1.442695
    %v681 = vpow.pop %v680
    %v682 = vmul.f32 %v615, 1.442695
    %v683 = vpow.pop %v682
    %v684 = vmul.f32 %v616, 1.442695
    %v685 = vpow.pop %v684
    %v686 = vmul.f32 %v617, 1.442695
    %v687 = vpow.pop %v686
    %v688 = vmul.f32 %v618, 1.442695
    %v689 = vpow.pop %v688
    %v690 = vmul.f32 %v619, 1.442695
    %v691 = vpow.pop %v690
    %v692 = vmul.f32 %v620, 1.442695
    %v693 = vpow.pop %v692
    %v694 = vmul.f32 %v621, 1.442695
    %v695 = vpow.pop %v694
    %v696 = vmul.f32 %v622, 1.442695
    %v697 = vpow.pop %v696
    %v698 = vmul.f32 %v623, 1.442695
    %v699 = vpow.pop %v698
    %v700 = vmul.f32 %v624, 1.442695
    %v701 = vpow.pop %v700
    %v702 = vmul.f32 %v625, 1.442695
    %v703 = vpow.pop %v702
    %v704 = vmul.f32 %v626, 1.442695
    %v705 = vpow.pop %v704
    %v706 = vmul.f32 %v627, 1.442695
    %v707 = vpow.pop %v706
    %v708 = vmul.f32 %v628, 1.442695
    %v709 = vpow.pop %v708
    %v710 = vmul.f32 %v629, 1.442695
    %v711 = vpow.pop %v710
    %v712 = vmul.f32 %v630, 1.442695
    %v713 = vpow.pop %v712
    %v714 = vmul.f32 %v631, 1.442695
    %v715 = vpow.pop %v714
    %v716 = vmul.f32 %v632, 1.442695
    %v717 = vpow.pop %v716
    %v718 = vmul.f32 %v633, 1.442695
    %v719 = vpow.pop %v718
    %v720 = vmul.f32 %v634, 1.442695
    %v721 = vpow.pop %v720
    %v722 = vmul.f32 %v635, 1.442695
    %v723 = vpow.pop %v722
    %v724 = vmul.f32 %v636, 1.442695
    %v725 = vpow.pop %v724
    %v726 = vmul.f32 %v637, 1.442695
    %v727 = vpow.pop %v726
    %v728 = vmul.f32 %v638, 1.442695
    %v729 = vpow.pop %v728
    %v730 = vmul.f32 %v639, 1.442695
    %v731 = vpow.pop %v730
    %v732 = vmul.f32 %v640, 1.442695
    %v733 = vpow.pop %v732
    %v734 = vmul.f32 %v641, 1.442695
    %v735 = vpow.pop %v734
    %v736 = vmul.f32 %v642, 1.442695
    %v737 = vpow.pop %v736
    %v738 = vmul.f32 %v643, 1.442695
    %v739 = vpow.pop %v738
    %v740 = vmul.f32 %v644, 1.442695
    %v741 = vpow.pop %v740
    %v742 = vmul.f32 %v645, 1.442695
    %v743 = vpow.pop %v742
    %v744 = vmul.f32 %v646, 1.442695
    %v745 = vpow.pop %v744
    %v746 = vmul.f32 %v647, 1.442695
    %v747 = vpow.pop %v746
    %v748 = vmul.f32 %v648, 1.442695
    %v749 = vpow.pop %v748
    %v750 = vmul.f32 %v649, 1.442695
    %v751 = vpow.pop %v750
    %v752 = vmul.f32 %v650, 1.442695
    %v753 = vpow.pop %v752
    %v754 = vmul.f32 %v651, 1.442695
    %v755 = vpow.pop %v754
    %v756 = vmul.f32 %v652, 1.442695
    %v757 = vpow.pop %v756
    %v758 = vmul.f32 %v653, 1.442695
    %v759 = vpow.pop %v758
    %v760 = vmul.f32 %v654, 1.442695
    %v761 = vpow.pop %v760
    %v762 = vmul.f32 %v655, 1.442695
    %v763 = vpow.pop %v762
    %v764 = vmul.f32 %v656, 1.442695
    %v765 = vpow.pop %v764
    %v766 = vmul.f32 %v657, 1.442695
    %v767 = vpow.pop %v766
    %v768 = vmul.f32 %v658, 1.442695
    %v769 = vpow.pop %v768
    %v770 = vmul.f32 %v659, 1.442695
    %v771 = vpow.pop %v770
    %v772 = vmul.f32 %v660, 1.442695
    %v773 = vpow.pop %v772
    %v774 = vmul.f32 %v661, 1.442695
    %v775 = vpow.pop %v774
    %v776 = vmul.f32 %v662, 1.442695
    %v777 = vpow.pop %v776
    %v778 = vmul.f32 %v663, 1.442695
    %v779 = vpow.pop %v778
    %v780 = vmul.f32 %v664, 1.442695
    %v781 = vpow.pop %v780
    %v782 = vmul.f32 %v665, 1.442695
    %v783 = vpow.pop %v782
    %v784 = vmul.f32 %v666, 1.442695
    %v785 = vpow.pop %v784
    %v786 = vmul.f32 %v667, 1.442695
    %v787 = vpow.pop %v786
    %v788 = vmul.f32 %v668, 1.442695
    %v789 = vpow.pop %v788
    %v790 = vmul.f32 %v669, 1.442695
    %v791 = vpow.pop %v790
    %v792 = vmul.f32 %v670, 1.442695
    %v793 = vpow.pop %v792
    %v794 = vmul.f32 %v671, 1.442695
    %v795 = vpow.pop %v794
    %v796 = vmul.f32 %v672, 1.442695
    %v797 = vpow.pop %v796
    %v798 = vmul.f32 %v673, 1.442695
    %v799 = vpow.pop %v798
    %v800 = vmul.f32 %v674, 1.442695
    %v801 = vpow.pop %v800
    %v802 = vmul.f32 %v675, 1.442695
    %v803 = vpow.pop %v802
    %v804 = vsub.f32 %v677, 1.0
    %v805 = vsub.f32 %v679, 1.0
    %v806 = vsub.f32 %v681, 1.0
    %v807 = vsub.f32 %v683, 1.0
    %v808 = vsub.f32 %v685, 1.0
    %v809 = vsub.f32 %v687, 1.0
    %v810 = vsub.f32 %v689, 1.0
    %v811 = vsub.f32 %v691, 1.0
    %v812 = vsub.f32 %v693, 1.0
    %v813 = vsub.f32 %v695, 1.0
    %v814 = vsub.f32 %v697, 1.0
    %v815 = vsub.f32 %v699, 1.0
    %v816 = vsub.f32 %v701, 1.0
    %v817 = vsub.f32 %v703, 1.0
    %v818 = vsub.f32 %v705, 1.0
    %v819 = vsub.f32 %v707, 1.0
    %v820 = vsub.f32 %v709, 1.0
    %v821 = vsub.f32 %v711, 1.0
    %v822 = vsub.f32 %v713, 1.0
    %v823 = vsub.f32 %v715, 1.0
    %v824 = vsub.f32 %v717, 1.0
    %v825 = vsub.f32 %v719, 1.0
    %v826 = vsub.f32 %v721, 1.0
    %v827 = vsub.f32 %v723, 1.0
    %v828 = vsub.f32 %v725, 1.0
    %v829 = vsub.f32 %v727, 1.0
    %v830 = vsub.f32 %v729, 1.0
    %v831 = vsub.f32 %v731, 1.0
    %v832 = vsub.f32 %v733, 1.0
    %v833 = vsub.f32 %v735, 1.0
    %v834 = vsub.f32 %v737, 1.0
    %v835 = vsub.f32 %v739, 1.0
    %v836 = vsub.f32 %v741, 1.0
    %v837 = vsub.f32 %v743, 1.0
    %v838 = vsub.f32 %v745, 1.0
    %v839 = vsub.f32 %v747, 1.0
    %v840 = vsub.f32 %v749, 1.0
    %v841 = vsub.f32 %v751, 1.0
    %v842 = vsub.f32 %v753, 1.0
    %v843 = vsub.f32 %v755, 1.0
    %v844 = vsub.f32 %v757, 1.0
    %v845 = vsub.f32 %v759, 1.0
    %v846 = vsub.f32 %v761, 1.0
    %v847 = vsub.f32 %v763, 1.0
    %v848 = vsub.f32 %v765, 1.0
    %v849 = vsub.f32 %v767, 1.0
    %v850 = vsub.f32 %v769, 1.0
    %v851 = vsub.f32 %v771, 1.0
    %v852 = vsub.f32 %v773, 1.0
    %v853 = vsub.f32 %v775, 1.0
    %v854 = vsub.f32 %v777, 1.0
    %v855 = vsub.f32 %v779, 1.0
    %v856 = vsub.f32 %v781, 1.0
    %v857 = vsub.f32 %v783, 1.0
    %v858 = vsub.f32 %v785, 1.0
    %v859 = vsub.f32 %v787, 1.0
    %v860 = vsub.f32 %v789, 1.0
    %v861 = vsub.f32 %v791, 1.0
    %v862 = vsub.f32 %v793, 1.0
    %v863 = vsub.f32 %v795, 1.0
    %v864 = vsub.f32 %v797, 1.0
    %v865 = vsub.f32 %v799, 1.0
    %v866 = vsub.f32 %v801, 1.0
    %v867 = vsub.f32 %v803, 1.0
    %v868 = vsel %vm548, %v389, %v804
    %v869 = vsel %vm549, %v391, %v805
    %v870 = vsel %vm550, %v394, %v806
    %v871 = vsel %vm551, %v396, %v807
    %v872 = vsel %vm552, %v399, %v808
    %v873 = vsel %vm553, %v401, %v809
    %v874 = vsel %vm554, %v404, %v810
    %v875 = vsel %vm555, %v406, %v811
    %v876 = vsel %vm556, %v409, %v812
    %v877 = vsel %vm557, %v411, %v813
    %v878 = vsel %vm558, %v414, %v814
    %v879 = vsel %vm559, %v416, %v815
    %v880 = vsel %vm560, %v419, %v816
    %v881 = vsel %vm561, %v421, %v817
    %v882 = vsel %vm562, %v424, %v818
    %v883 = vsel %vm563, %v426, %v819
    %v884 = vsel %vm564, %v429, %v820
    %v885 = vsel %vm565, %v431, %v821
    %v886 = vsel %vm566, %v434, %v822
    %v887 = vsel %vm567, %v436, %v823
    %v888 = vsel %vm568, %v439, %v824
    %v889 = vsel %vm569, %v441, %v825
    %v890 = vsel %vm570, %v444, %v826
    %v891 = vsel %vm571, %v446, %v827
    %v892 = vsel %vm572, %v449, %v828
    %v893 = vsel %vm573, %v451, %v829
    %v894 = vsel %vm574, %v454, %v830
    %v895 = vsel %vm575, %v456, %v831
    %v896 = vsel %vm576, %v459, %v832
    %v897 = vsel %vm577, %v461, %v833
    %v898 = vsel %vm578, %v464, %v834
    %v899 = vsel %vm579, %v466, %v835
    %v900 = vsel %vm580, %v469, %v836
    %v901 = vsel %vm581, %v471, %v837
    %v902 = vsel %vm582, %v474, %v838
    %v903 = vsel %vm583, %v476, %v839
    %v904 = vsel %vm584, %v479, %v840
    %v905 = vsel %vm585, %v481, %v841
    %v906 = vsel %vm586, %v484, %v842
    %v907 = vsel %vm587, %v486, %v843
    %v908 = vsel %vm588, %v489, %v844
    %v909 = vsel %vm589, %v491, %v845
    %v910 = vsel %vm590, %v494, %v846
    %v911 = vsel %vm591, %v496, %v847
    %v912 = vsel %vm592, %v499, %v848
    %v913 = vsel %vm593, %v501, %v849
    %v914 = vsel %vm594, %v504, %v850
    %v915 = vsel %vm595, %v506, %v851
    %v916 = vsel %vm596, %v509, %v852
    %v917 = vsel %vm597, %v511, %v853
    %v918 = vsel %vm598, %v514, %v854
    %v919 = vsel %vm599, %v516, %v855
    %v920 = vsel %vm600, %v519, %v856
    %v921 = vsel %vm601, %v521, %v857
    %v922 = vsel %vm602, %v524, %v858
    %v923 = vsel %vm603, %v526, %v859
    %v924 = vsel %vm604, %v529, %v860
    %v925 = vsel %vm605, %v531, %v861
    %v926 = vsel %vm606, %v534, %v862
    %v927 = vsel %vm607, %v536, %v863
    %v928 = vsel %vm608, %v539, %v864
    %v929 = vsel %vm609, %v541, %v865
    %v930 = vsel %vm610, %v544, %v866
    %v931 = vsel %vm611, %v546, %v867
    %v932 = vpack.c.bf16 %v869, %v868
    %v933 = vpack.c.bf16 %v871, %v870
    %v934 = vpack.c.bf16 %v873, %v872
    %v935 = vpack.c.bf16 %v875, %v874
    %v936 = vpack.c.bf16 %v877, %v876
    %v937 = vpack.c.bf16 %v879, %v878
    %v938 = vpack.c.bf16 %v881, %v880
    %v939 = vpack.c.bf16 %v883, %v882
    %v940 = vpack.c.bf16 %v885, %v884
    %v941 = vpack.c.bf16 %v887, %v886
    %v942 = vpack.c.bf16 %v889, %v888
    %v943 = vpack.c.bf16 %v891, %v890
    %v944 = vpack.c.bf16 %v893, %v892
    %v945 = vpack.c.bf16 %v895, %v894
    %v946 = vpack.c.bf16 %v897, %v896
    %v947 = vpack.c.bf16 %v899, %v898
    %v948 = vpack.c.bf16 %v901, %v900
    %v949 = vpack.c.bf16 %v903, %v902
    %v950 = vpack.c.bf16 %v905, %v904
    %v951 = vpack.c.bf16 %v907, %v906
    %v952 = vpack.c.bf16 %v909, %v908
    %v953 = vpack.c.bf16 %v911, %v910
    %v954 = vpack.c.bf16 %v913, %v912
    %v955 = vpack.c.bf16 %v915, %v914
    %v956 = vpack.c.bf16 %v917, %v916
    %v957 = vpack.c.bf16 %v919, %v918
    %v958 = vpack.c.bf16 %v921, %v920
    %v959 = vpack.c.bf16 %v923, %v922
    %v960 = vpack.c.bf16 %v925, %v924
    %v961 = vpack.c.bf16 %v927, %v926
    %v962 = vpack.c.bf16 %v929, %v928
    %v963 = vpack.c.bf16 %v931, %v930
    %v964 = vld [vmem:[%s3] sm:$0xf]
    %v965 = vld [vmem:[%s3 + $0x4] sm:$0xf]
    %v966 = vld [vmem:[%s3 + $0x8] sm:$0xf]
    %v967 = vld [vmem:[%s3 + $0xc] sm:$0xf]
    %v968 = vld [vmem:[%s3 + $0x10] sm:$0xf]
    %v969 = vld [vmem:[%s3 + $0x14] sm:$0xf]
    %v970 = vld [vmem:[%s3 + $0x18] sm:$0xf]
    %v971 = vld [vmem:[%s3 + $0x1c] sm:$0xf]
    %v972 = vld [vmem:[%s3 + $0x20] sm:$0xf]
    %v973 = vld [vmem:[%s3 + $0x24] sm:$0xf]
    %v974 = vld [vmem:[%s3 + $0x28] sm:$0xf]
    %v975 = vld [vmem:[%s3 + $0x2c] sm:$0xf]
    %v976 = vld [vmem:[%s3 + $0x30] sm:$0xf]
    %v977 = vld [vmem:[%s3 + $0x34] sm:$0xf]
    %v978 = vld [vmem:[%s3 + $0x38] sm:$0xf]
    %v979 = vld [vmem:[%s3 + $0x3c] sm:$0xf]
    %v980 = vld [vmem:[%s4] sm:$0x1]
    %v982 = vperm.slane %v980, 0
    %v1000 = vunpack.c.l.b16 %v964
    %v1001 = vunpack.c.l.b16 %v965
    %v1002 = vunpack.c.l.b16 %v966
    %v1003 = vunpack.c.l.b16 %v967
    %v1004 = vunpack.c.l.b16 %v968
    %v1005 = vunpack.c.l.b16 %v969
    %v1006 = vunpack.c.l.b16 %v970
    %v1007 = vunpack.c.l.b16 %v971
    %v1008 = vunpack.c.l.b16 %v972
    %v1009 = vunpack.c.l.b16 %v973
    %v1010 = vunpack.c.l.b16 %v974
    %v1011 = vunpack.c.l.b16 %v975
    %v1012 = vunpack.c.l.b16 %v976
    %v1013 = vunpack.c.l.b16 %v977
    %v1014 = vunpack.c.l.b16 %v978
    %v1015 = vunpack.c.l.b16 %v979
    %v1016 = vpack.c.b16 %v1001, %v1000
    %v1017 = vpack.c.b16 %v1003, %v1002
    %v1018 = vpack.c.b16 %v1005, %v1004
    %v1019 = vpack.c.b16 %v1007, %v1006
    %v1020 = vpack.c.b16 %v1009, %v1008
    %v1021 = vpack.c.b16 %v1011, %v1010
    %v1022 = vpack.c.b16 %v1013, %v1012
    %v1023 = vpack.c.b16 %v1015, %v1014
    %1032 = vmatpush.bf16.msra.mxu0 %v1023
    %1033 = vmatpush.bf16.msra.mxu0 %v1022
    %1034 = vmatpush.bf16.msra.mxu0 %v1021
    %1035 = vmatpush.bf16.msra.mxu0 %v1020
    %1036 = vmatpush.bf16.msra.mxu0 %v1019
    %1037 = vmatpush.bf16.msra.mxu0 %v1018
    %1038 = vmatpush.bf16.msra.mxu0 %v1017
    %1039 = vmatpush.bf16.msra.mxu0 %v1016
    %1040 = vmatmul.bf16.gmra.mxu0 %v932
    %v1041 = vpop.f32.mrf.mxu0
    %v1042 = vadd.f32 %v982, %v1041
    %v1043 = vpop.f32.mrf.mxu0
    %v1044 = vadd.f32 %v982, %v1043
    %1045 = vmatmul.bf16.gmra.mxu0 %v933
    %v1046 = vpop.f32.mrf.mxu0
    %v1047 = vadd.f32 %v982, %v1046
    %v1048 = vpop.f32.mrf.mxu0
    %v1049 = vadd.f32 %v982, %v1048
    %1050 = vmatmul.bf16.gmra.mxu0 %v934
    %v1051 = vpop.f32.mrf.mxu0
    %v1052 = vadd.f32 %v982, %v1051
    %v1053 = vpop.f32.mrf.mxu0
    %v1054 = vadd.f32 %v982, %v1053
    %1055 = vmatmul.bf16.gmra.mxu0 %v935
    %v1056 = vpop.f32.mrf.mxu0
    %v1057 = vadd.f32 %v982, %v1056
    %v1058 = vpop.f32.mrf.mxu0
    %v1059 = vadd.f32 %v982, %v1058
    %1060 = vmatmul.bf16.gmra.mxu0 %v936
    %v1061 = vpop.f32.mrf.mxu0
    %v1062 = vadd.f32 %v982, %v1061
    %v1063 = vpop.f32.mrf.mxu0
    %v1064 = vadd.f32 %v982, %v1063
    %1065 = vmatmul.bf16.gmra.mxu0 %v937
    %v1066 = vpop.f32.mrf.mxu0
    %v1067 = vadd.f32 %v982, %v1066
    %v1068 = vpop.f32.mrf.mxu0
    %v1069 = vadd.f32 %v982, %v1068
    %1070 = vmatmul.bf16.gmra.mxu0 %v938
    %v1071 = vpop.f32.mrf.mxu0
    %v1072 = vadd.f32 %v982, %v1071
    %v1073 = vpop.f32.mrf.mxu0
    %v1074 = vadd.f32 %v982, %v1073
    %1075 = vmatmul.bf16.gmra.mxu0 %v939
    %v1076 = vpop.f32.mrf.mxu0
    %v1077 = vadd.f32 %v982, %v1076
    %v1078 = vpop.f32.mrf.mxu0
    %v1079 = vadd.f32 %v982, %v1078
    %1080 = vmatmul.bf16.gmra.mxu0 %v940
    %v1081 = vpop.f32.mrf.mxu0
    %v1082 = vadd.f32 %v982, %v1081
    %v1083 = vpop.f32.mrf.mxu0
    %v1084 = vadd.f32 %v982, %v1083
    %1085 = vmatmul.bf16.gmra.mxu0 %v941
    %v1086 = vpop.f32.mrf.mxu0
    %v1087 = vadd.f32 %v982, %v1086
    %v1088 = vpop.f32.mrf.mxu0
    %v1089 = vadd.f32 %v982, %v1088
    %1090 = vmatmul.bf16.gmra.mxu0 %v942
    %v1091 = vpop.f32.mrf.mxu0
    %v1092 = vadd.f32 %v982, %v1091
    %v1093 = vpop.f32.mrf.mxu0
    %v1094 = vadd.f32 %v982, %v1093
    %1095 = vmatmul.bf16.gmra.mxu0 %v943
    %v1096 = vpop.f32.mrf.mxu0
    %v1097 = vadd.f32 %v982, %v1096
    %v1098 = vpop.f32.mrf.mxu0
    %v1099 = vadd.f32 %v982, %v1098
    %1100 = vmatmul.bf16.gmra.mxu0 %v944
    %v1101 = vpop.f32.mrf.mxu0
    %v1102 = vadd.f32 %v982, %v1101
    %v1103 = vpop.f32.mrf.mxu0
    %v1104 = vadd.f32 %v982, %v1103
    %1105 = vmatmul.bf16.gmra.mxu0 %v945
    %v1106 = vpop.f32.mrf.mxu0
    %v1107 = vadd.f32 %v982, %v1106
    %v1108 = vpop.f32.mrf.mxu0
    %v1109 = vadd.f32 %v982, %v1108
    %1110 = vmatmul.bf16.gmra.mxu0 %v946
    %v1111 = vpop.f32.mrf.mxu0
    %v1112 = vadd.f32 %v982, %v1111
    %v1113 = vpop.f32.mrf.mxu0
    %v1114 = vadd.f32 %v982, %v1113
    %1115 = vmatmul.bf16.gmra.mxu0 %v947
    %v1116 = vpop.f32.mrf.mxu0
    %v1117 = vadd.f32 %v982, %v1116
    %v1118 = vpop.f32.mrf.mxu0
    %v1119 = vadd.f32 %v982, %v1118
    %1120 = vmatmul.bf16.gmra.mxu0 %v948
    %v1121 = vpop.f32.mrf.mxu0
    %v1122 = vadd.f32 %v982, %v1121
    %v1123 = vpop.f32.mrf.mxu0
    %v1124 = vadd.f32 %v982, %v1123
    %1125 = vmatmul.bf16.gmra.mxu0 %v949
    %v1126 = vpop.f32.mrf.mxu0
    %v1127 = vadd.f32 %v982, %v1126
    %v1128 = vpop.f32.mrf.mxu0
    %v1129 = vadd.f32 %v982, %v1128
    %1130 = vmatmul.bf16.gmra.mxu0 %v950
    %v1131 = vpop.f32.mrf.mxu0
    %v1132 = vadd.f32 %v982, %v1131
    %v1133 = vpop.f32.mrf.mxu0
    %v1134 = vadd.f32 %v982, %v1133
    %1135 = vmatmul.bf16.gmra.mxu0 %v951
    %v1136 = vpop.f32.mrf.mxu0
    %v1137 = vadd.f32 %v982, %v1136
    %v1138 = vpop.f32.mrf.mxu0
    %v1139 = vadd.f32 %v982, %v1138
    %1140 = vmatmul.bf16.gmra.mxu0 %v952
    %v1141 = vpop.f32.mrf.mxu0
    %v1142 = vadd.f32 %v982, %v1141
    %v1143 = vpop.f32.mrf.mxu0
    %v1144 = vadd.f32 %v982, %v1143
    %1145 = vmatmul.bf16.gmra.mxu0 %v953
    %v1146 = vpop.f32.mrf.mxu0
    %v1147 = vadd.f32 %v982, %v1146
    %v1148 = vpop.f32.mrf.mxu0
    %v1149 = vadd.f32 %v982, %v1148
    %1150 = vmatmul.bf16.gmra.mxu0 %v954
    %v1151 = vpop.f32.mrf.mxu0
    %v1152 = vadd.f32 %v982, %v1151
    %v1153 = vpop.f32.mrf.mxu0
    %v1154 = vadd.f32 %v982, %v1153
    %1155 = vmatmul.bf16.gmra.mxu0 %v955
    %v1156 = vpop.f32.mrf.mxu0
    %v1157 = vadd.f32 %v982, %v1156
    %v1158 = vpop.f32.mrf.mxu0
    %v1159 = vadd.f32 %v982, %v1158
    %1160 = vmatmul.bf16.gmra.mxu0 %v956
    %v1161 = vpop.f32.mrf.mxu0
    %v1162 = vadd.f32 %v982, %v1161
    %v1163 = vpop.f32.mrf.mxu0
    %v1164 = vadd.f32 %v982, %v1163
    %1165 = vmatmul.bf16.gmra.mxu0 %v957
    %v1166 = vpop.f32.mrf.mxu0
    %v1167 = vadd.f32 %v982, %v1166
    %v1168 = vpop.f32.mrf.mxu0
    %v1169 = vadd.f32 %v982, %v1168
    %1170 = vmatmul.bf16.gmra.mxu0 %v958
    %v1171 = vpop.f32.mrf.mxu0
    %v1172 = vadd.f32 %v982, %v1171
    %v1173 = vpop.f32.mrf.mxu0
    %v1174 = vadd.f32 %v982, %v1173
    %1175 = vmatmul.bf16.gmra.mxu0 %v959
    %v1176 = vpop.f32.mrf.mxu0
    %v1177 = vadd.f32 %v982, %v1176
    %v1178 = vpop.f32.mrf.mxu0
    %v1179 = vadd.f32 %v982, %v1178
    %1180 = vmatmul.bf16.gmra.mxu0 %v960
    %v1181 = vpop.f32.mrf.mxu0
    %v1182 = vadd.f32 %v982, %v1181
    %v1183 = vpop.f32.mrf.mxu0
    %v1184 = vadd.f32 %v982, %v1183
    %1185 = vmatmul.bf16.gmra.mxu0 %v961
    %v1186 = vpop.f32.mrf.mxu0
    %v1187 = vadd.f32 %v982, %v1186
    %v1188 = vpop.f32.mrf.mxu0
    %v1189 = vadd.f32 %v982, %v1188
    %1190 = vmatmul.bf16.gmra.mxu0 %v962
    %v1191 = vpop.f32.mrf.mxu0
    %v1192 = vadd.f32 %v982, %v1191
    %v1193 = vpop.f32.mrf.mxu0
    %v1194 = vadd.f32 %v982, %v1193
    %1195 = vmatmul.bf16.gmra.mxu0 %v963
    %v1196 = vpop.f32.mrf.mxu0
    %v1197 = vadd.f32 %v982, %v1196
    %v1198 = vpop.f32.mrf.mxu0
    %v1199 = vadd.f32 %v982, %v1198
    %1200 = vdwg.mxu0
    %1201 = vst [vmem:[#allocation2] sm:$0xff] %v1042
    %1202 = vst [vmem:[#allocation2 + $0x8] sm:$0xff] %v1044
    %1203 = vst [vmem:[#allocation2 + $0x10] sm:$0xff] %v1047
    %1204 = vst [vmem:[#allocation2 + $0x18] sm:$0xff] %v1049
    %1205 = vst [vmem:[#allocation2 + $0x20] sm:$0xff] %v1052
    %1206 = vst [vmem:[#allocation2 + $0x28] sm:$0xff] %v1054
    %1207 = vst [vmem:[#allocation2 + $0x30] sm:$0xff] %v1057
    %1208 = vst [vmem:[#allocation2 + $0x38] sm:$0xff] %v1059
    %1209 = vst [vmem:[#allocation2 + $0x40] sm:$0xff] %v1062
    %1210 = vst [vmem:[#allocation2 + $0x48] sm:$0xff] %v1064
    %1211 = vst [vmem:[#allocation2 + $0x50] sm:$0xff] %v1067
    %1212 = vst [vmem:[#allocation2 + $0x58] sm:$0xff] %v1069
    %1213 = vst [vmem:[#allocation2 + $0x60] sm:$0xff] %v1072
    %1214 = vst [vmem:[#allocation2 + $0x68] sm:$0xff] %v1074
    %1215 = vst [vmem:[#allocation2 + $0x70] sm:$0xff] %v1077
    %1216 = vst [vmem:[#allocation2 + $0x78] sm:$0xff] %v1079
    %1217 = vst [vmem:[#allocation2 + $0x80] sm:$0xff] %v1082
    %1218 = vst [vmem:[#allocation2 + $0x88] sm:$0xff] %v1084
    %1219 = vst [vmem:[#allocation2 + $0x90] sm:$0xff] %v1087
    %1220 = vst [vmem:[#allocation2 + $0x98] sm:$0xff] %v1089
    %1221 = vst [vmem:[#allocation2 + $0xa0] sm:$0xff] %v1092
    %1222 = vst [vmem:[#allocation2 + $0xa8] sm:$0xff] %v1094
    %1223 = vst [vmem:[#allocation2 + $0xb0] sm:$0xff] %v1097
    %1224 = vst [vmem:[#allocation2 + $0xb8] sm:$0xff] %v1099
    %1225 = vst [vmem:[#allocation2 + $0xc0] sm:$0xff] %v1102
    %1226 = vst [vmem:[#allocation2 + $0xc8] sm:$0xff] %v1104
    %1227 = vst [vmem:[#allocation2 + $0xd0] sm:$0xff] %v1107
    %1228 = vst [vmem:[#allocation2 + $0xd8] sm:$0xff] %v1109
    %1229 = vst [vmem:[#allocation2 + $0xe0] sm:$0xff] %v1112
    %1230 = vst [vmem:[#allocation2 + $0xe8] sm:$0xff] %v1114
    %1231 = vst [vmem:[#allocation2 + $0xf0] sm:$0xff] %v1117
    %1232 = vst [vmem:[#allocation2 + $0xf8] sm:$0xff] %v1119
    %1233 = vst [vmem:[#allocation2 + $0x100] sm:$0xff] %v1122
    %1234 = vst [vmem:[#allocation2 + $0x108] sm:$0xff] %v1124
    %1235 = vst [vmem:[#allocation2 + $0x110] sm:$0xff] %v1127
    %1236 = vst [vmem:[#allocation2 + $0x118] sm:$0xff] %v1129
    %1237 = vst [vmem:[#allocation2 + $0x120] sm:$0xff] %v1132
    %1238 = vst [vmem:[#allocation2 + $0x128] sm:$0xff] %v1134
    %1239 = vst [vmem:[#allocation2 + $0x130] sm:$0xff] %v1137
    %1240 = vst [vmem:[#allocation2 + $0x138] sm:$0xff] %v1139
    %1241 = vst [vmem:[#allocation2 + $0x140] sm:$0xff] %v1142
    %1242 = vst [vmem:[#allocation2 + $0x148] sm:$0xff] %v1144
    %1243 = vst [vmem:[#allocation2 + $0x150] sm:$0xff] %v1147
    %1244 = vst [vmem:[#allocation2 + $0x158] sm:$0xff] %v1149
    %1245 = vst [vmem:[#allocation2 + $0x160] sm:$0xff] %v1152
    %1246 = vst [vmem:[#allocation2 + $0x168] sm:$0xff] %v1154
    %1247 = vst [vmem:[#allocation2 + $0x170] sm:$0xff] %v1157
    %1248 = vst [vmem:[#allocation2 + $0x178] sm:$0xff] %v1159
    %1249 = vst [vmem:[#allocation2 + $0x180] sm:$0xff] %v1162
    %1250 = vst [vmem:[#allocation2 + $0x188] sm:$0xff] %v1164
    %1251 = vst [vmem:[#allocation2 + $0x190] sm:$0xff] %v1167
    %1252 = vst [vmem:[#allocation2 + $0x198] sm:$0xff] %v1169
    %1253 = vst [vmem:[#allocation2 + $0x1a0] sm:$0xff] %v1172
    %1254 = vst [vmem:[#allocation2 + $0x1a8] sm:$0xff] %v1174
    %1255 = vst [vmem:[#allocation2 + $0x1b0] sm:$0xff] %v1177
    %1256 = vst [vmem:[#allocation2 + $0x1b8] sm:$0xff] %v1179
    %1257 = vst [vmem:[#allocation2 + $0x1c0] sm:$0xff] %v1182
    %1258 = vst [vmem:[#allocation2 + $0x1c8] sm:$0xff] %v1184
    %1259 = vst [vmem:[#allocation2 + $0x1d0] sm:$0xff] %v1187
    %1260 = vst [vmem:[#allocation2 + $0x1d8] sm:$0xff] %v1189
    %1261 = vst [vmem:[#allocation2 + $0x1e0] sm:$0xff] %v1192
    %1262 = vst [vmem:[#allocation2 + $0x1e8] sm:$0xff] %v1194
    %1263 = vst [vmem:[#allocation2 + $0x1f0] sm:$0xff] %v1197
    %1264 = vst [vmem:[#allocation2 + $0x1f8] sm:$0xff] %v1199
    // Predicated region
    $region22: #{tpu_custom_call.1} parent=1 // pred_check
      _
    $region23: #{tpu_custom_call.1} parent=1 // pred_check_branch
      %1266 = sbr.rel (0) target = $region25
    $region24: #{tpu_custom_call.1} parent=1 // pred_region
      %1268 = vsyncadd [#allocation3], 0
      %s1269 = sshll.u32 [#allocation2], 4
      %s1270 = int_to_ptr.vmem [resolvable:$true] %s1269
      %s1271 = sshll.u32 %s5, 4
      %s1272 = int_to_ptr.hbm [resolvable:$true] %s1271
      %1277 = dma.vmem_to_hbm [thread:$0]  %s1270, 8192, %s1272, [#allocation3], 128, 128, 8
    $region25: #{tpu_custom_call.1} parent=1 // pred_fallthru
      _
    // Predicated region
    $region26: #{tpu_custom_call.1} parent=1 // pred_check
      _
    $region27: #{tpu_custom_call.1} parent=1 // pred_check_branch
      %1279 = sbr.rel (0) target = $region29
    $region28: #{tpu_custom_call.1} parent=1 // pred_region
      %1281 = dma.done [#allocation3], 8192
    $region29: #{tpu_custom_call.1} parent=1 // pred_fallthru
      _
    %1282 = vsyncpa [#allocation3], 1

</llo_original>
